<compile_context>
chip_gen: v6e
topology: v6e:2x2x1
jax: 0.10.0
libtpu: 0.0.40
codegen_flags: <defaults>
</compile_context>

<pallas_src>
import jax
import jax.numpy as jnp
from jax.experimental import pallas as pl
from jax.experimental.pallas import tpu as pltpu


# ----------------------------------------------------------------------------
# helpers
# ----------------------------------------------------------------------------
def _round_up(x, m):
    return (x + m - 1) // m * m


def _pad_axis(a, axis, new_size):
    pad = new_size - a.shape[axis]
    if pad == 0:
        return a
    cfg = [(0, 0)] * a.ndim
    cfg[axis] = (0, pad)
    return jnp.pad(a, cfg)  # zero padding


def _divisor_tile(total, target, align):
    """Largest t <= target with total % t == 0 and t % align == 0.
    Falls back to the full extent (always a legal block size)."""
    cap = min(total, max(target, align))
    t = (cap // align) * align
    while t >= align:
        if total % t == 0:
            return t
        t -= align
    return total


def _pool_tiles(N, C, HW, x_itemsize, budget, hw_target=None):
    """Phase-1 tiles sized from actual C/HW and the VMEM budget:
       2 x (t_n,t_c,t_hw) input buffers + 2 x (t_n,t_c) f32 out + f32 scratch."""
    t_hw = _divisor_tile(HW, hw_target if hw_target else 512, 128)
    t_c = _divisor_tile(C, 512, 128)                       # falls back to C when C<128
    per_row = t_c * (2 * t_hw * x_itemsize + 12)           # per batch row, bytes
    n_cap = max(budget // max(per_row, 1), 8)
    t_n = _divisor_tile(N, min(int(n_cap), 256), 8)
    return t_n, t_c, t_hw


def _mlp_tiles(N_p, C, hidden_p, out_p, w_itemsize, h_itemsize, budget,
               h_target=None, o_target=None):
    """Phase-2 tiles from the VMEM budget (conservative for v7x 64 MiB)."""
    # kernel A: resident pooled (f32, dbl-buffered) + per-hidden-column cost
    #   (w1 dbl-buf, h-out dbl-buf, f32 h temporary)
    fixed_a = 2 * N_p * C * 4
    per_h_a = 2 * C * w_itemsize + 2 * N_p * h_itemsize + N_p * 4
    cap_a = max((budget - fixed_a) // max(per_h_a, 1), 128)
    t_h_a = _divisor_tile(hidden_p, min(int(cap_a), h_target or 2048), 128)

    # kernel B: out dbl-buf + f32 acc, h dbl-buf, w2 dbl-buf -- ~1/3 budget each
    cap_o = max(budget // (36 * N_p), 128)
    t_o = _divisor_tile(out_p, min(int(cap_o), o_target or 1024), 128)
    cap_h1 = max(budget // (6 * N_p * h_itemsize), 128)
    cap_h2 = max(budget // (6 * t_o * w_itemsize), 128)
    t_h_b = _divisor_tile(hidden_p, min(int(cap_h1), int(cap_h2), h_target or 2048), 128)
    return t_h_a, t_h_b, t_o


# ----------------------------------------------------------------------------
# Phase 1: global average pool (NCHW -> (N, C)), streamed over (N, C, H*W)
# ----------------------------------------------------------------------------
def _make_pool_kernel(inv_hw):
    def pool_kernel(x_ref, pooled_ref, acc_ref):
        hw = pl.program_id(2)

        @pl.when(hw == 0)
        def _init():
            acc_ref[...] = jnp.zeros_like(acc_ref)

        # x streamed at its stored dtype; accumulate per-channel sums in f32.
        acc_ref[...] += jnp.sum(x_ref[...].astype(jnp.float32), axis=-1)

        @pl.when(hw == pl.num_programs(2) - 1)
        def _finalize():
            pooled_ref[...] = (acc_ref[...] * inv_hw).astype(pooled_ref.dtype)

    return pool_kernel


# ----------------------------------------------------------------------------
# Phase 2a: Linear1 -> BatchNorm1d(train) -> ReLU, one pass per hidden tile
# ----------------------------------------------------------------------------
def _make_hidden_kernel(inv_n, eps=1e-5):
    def hidden_kernel(pooled_ref, w1_ref, gamma_ref, beta_ref, h_ref):
        # Linear1 slice for this hidden tile.  b1 is omitted: it is
        # algebraically cancelled by the training-mode BN batch-mean
        # subtraction.  bf16 MXU operands, f32 accumulation.
        h = jnp.dot(pooled_ref[...].astype(w1_ref.dtype), w1_ref[...],
                    preferred_element_type=jnp.float32)

        # One-pass BatchNorm1d batch statistics (biased variance), f32.
        # Padded batch rows are exactly zero (zero pooled rows, no bias), so
        # dividing by the real N gives the correct statistics.
        s = jnp.sum(h, axis=0, keepdims=True)
        sq = jnp.sum(h * h, axis=0, keepdims=True)
        mean = s * inv_n
        var = sq * inv_n - mean * mean
        scale = gamma_ref[...] * jax.lax.rsqrt(var + eps)
        shift = beta_ref[...] - mean * scale
        h_ref[...] = jnp.maximum(h * scale + shift, 0.0).astype(h_ref.dtype)

    return hidden_kernel


# ----------------------------------------------------------------------------
# Phase 2b: Linear2 (standard tiled matmul with f32 accumulator)
# ----------------------------------------------------------------------------
def _out_matmul_kernel(h_ref, w2_ref, b2_ref, o_ref, acc_ref):
    k = pl.program_id(1)

    @pl.when(k == 0)
    def _init():
        acc_ref[...] = jnp.zeros_like(acc_ref)

    acc_ref[...] += jnp.dot(h_ref[...], w2_ref[...],
                            preferred_element_type=jnp.float32)

    @pl.when(k == pl.num_programs(1) - 1)
    def _finalize():
        o_ref[...] = (acc_ref[...] + b2_ref[...]).astype(o_ref.dtype)


# ----------------------------------------------------------------------------
# one-time parameter preparation (hoisted out of the forward call)
# ----------------------------------------------------------------------------
def prepare_projector_params(w1, b1, gamma, beta, w2, b2, *,
                             param_dtype=jnp.bfloat16):
    """Cast + 128-lane zero-padding, done once at setup.

    b1 is dropped: with training-mode BatchNorm1d (batch statistics) the
    Linear1 bias is exactly cancelled by the batch-mean subtraction.
    # TODO(synk): eval-mode BatchNorm (running_mean/var) would need b1 and the
    # running statistics folded into gamma/beta instead.
    """
    del b1
    C, hidden = w1.shape
    out_dim = w2.shape[1]
    hidden_p = _round_up(hidden, 128)
    out_p = _round_up(out_dim, 128)
    return dict(
        input_dim=C, hidden_dim=hidden, output_dim=out_dim,
        hidden_p=hidden_p, out_p=out_p, param_dtype=jnp.dtype(param_dtype),
        w1=_pad_axis(w1.astype(param_dtype), 1, hidden_p),
        gamma=_pad_axis(gamma.astype(jnp.float32).reshape(1, hidden), 1, hidden_p),
        beta=_pad_axis(beta.astype(jnp.float32).reshape(1, hidden), 1, hidden_p),
        w2=_pad_axis(_pad_axis(w2.astype(param_dtype), 0, hidden_p), 1, out_p),
        b2=_pad_axis(b2.astype(jnp.float32).reshape(1, out_dim), 1, out_p),
    )


# ----------------------------------------------------------------------------
# forward
# ----------------------------------------------------------------------------
def projector_forward(x, params, *,
                      vmem_budget_bytes=36 * 1024 * 1024,
                      vmem_limit_bytes=48 * 1024 * 1024,
                      tile_hw=None, tile_h=None, tile_o=None):
    """x: (N, C, H, W).  Returns (N, output_dim) float32 (training-mode BN)."""
    N, C, H, W = x.shape
    assert C == params["input_dim"]
    HW = H * W
    hidden_p = params["hidden_p"]
    out_p = params["out_p"]
    out_dim = params["output_dim"]
    pdt = params["param_dtype"]
    w_item = pdt.itemsize
    h_dtype = pdt                       # h streamed through HBM at weight dtype
    h_item = jnp.dtype(h_dtype).itemsize

    # ---- phase 1: global average pool (x streamed at its stored dtype) -----
    x3 = x.reshape(N, C, HW)            # contiguous view reshape, no extra pass
    t_n, t_c, t_hw = _pool_tiles(N, C, HW, x.dtype.itemsize,
                                 vmem_budget_bytes, hw_target=tile_hw)
    pooled = pl.pallas_call(
        _make_pool_kernel(1.0 / HW),
        out_shape=jax.ShapeDtypeStruct((N, C), jnp.float32),   # pooled stays f32
        grid=(N // t_n, C // t_c, HW // t_hw),
        in_specs=[pl.BlockSpec((t_n, t_c, t_hw), lambda i, c, hw: (i, c, hw))],
        out_specs=pl.BlockSpec((t_n, t_c), lambda i, c, hw: (i, c)),
        scratch_shapes=[pltpu.VMEM((t_n, t_c), jnp.float32)],
        compiler_params=pltpu.CompilerParams(
            dimension_semantics=("parallel", "parallel", "arbitrary"),
            vmem_limit_bytes=vmem_limit_bytes),
    )(x3)

    # ---- batch padding: bf16 sublane packing wants N % 16 == 0 -------------
    n_align = 16 if h_item < 4 else 8
    N_p = _round_up(N, n_align)
    pooled = _pad_axis(pooled, 0, N_p)   # zero rows -> zero h rows (b1 dropped)

    t_h_a, t_h_b, t_o = _mlp_tiles(N_p, C, hidden_p, out_p, w_item, h_item,
                                   vmem_budget_bytes,
                                   h_target=tile_h, o_target=tile_o)

    # ---- phase 2a: Linear1 + BN(train) + ReLU, each hidden tile exactly once
    h = pl.pallas_call(
        _make_hidden_kernel(1.0 / N),
        out_shape=jax.ShapeDtypeStruct((N_p, hidden_p), h_dtype),
        grid=(hidden_p // t_h_a,),
        in_specs=[
            pl.BlockSpec((N_p, C), lambda k: (0, 0)),       # pooled (full batch)
            pl.BlockSpec((C, t_h_a), lambda k: (0, k)),     # w1 hidden tile
            pl.BlockSpec((1, t_h_a), lambda k: (0, k)),     # gamma tile
            pl.BlockSpec((1, t_h_a), lambda k: (0, k)),     # beta tile
        ],
        out_specs=pl.BlockSpec((N_p, t_h_a), lambda k: (0, k)),
        compiler_params=pltpu.CompilerParams(
            dimension_semantics=("parallel",),
            vmem_limit_bytes=vmem_limit_bytes),
    )(pooled, params["w1"], params["gamma"], params["beta"])

    # ---- phase 2b: Linear2 (tiled matmul, f32 accumulator) ------------------
    out_padded = pl.pallas_call(
        _out_matmul_kernel,
        out_shape=jax.ShapeDtypeStruct((N_p, out_p), jnp.float32),
        grid=(out_p // t_o, hidden_p // t_h_b),
        in_specs=[
            pl.BlockSpec((N_p, t_h_b), lambda j, k: (0, k)),   # h tile
            pl.BlockSpec((t_h_b, t_o), lambda j, k: (k, j)),   # w2 tile
            pl.BlockSpec((1, t_o), lambda j, k: (0, j)),       # b2 tile
        ],
        out_specs=pl.BlockSpec((N_p, t_o), lambda j, k: (0, j)),
        scratch_shapes=[pltpu.VMEM((N_p, t_o), jnp.float32)],
        compiler_params=pltpu.CompilerParams(
            dimension_semantics=("parallel", "arbitrary"),
            vmem_limit_bytes=vmem_limit_bytes),
    )(h, params["w2"], params["b2"])

    return out_padded[:N, :out_dim]


# ----------------------------------------------------------------------------
# pure-JAX reference (full module semantics, including b1)
# ----------------------------------------------------------------------------
def reference_forward(x, w1, b1, gamma, beta, w2, b2):
    pooled = jnp.mean(x.astype(jnp.float32), axis=(2, 3))
    h = pooled @ w1 + b1.reshape(1, -1)
    mean = jnp.mean(h, axis=0, keepdims=True)
    var = jnp.mean((h - mean) ** 2, axis=0, keepdims=True)   # biased
    h = (h - mean) * jax.lax.rsqrt(var + 1e-5) * gamma.reshape(1, -1) + beta.reshape(1, -1)
    h = jnp.maximum(h, 0.0)
    return h @ w2 + b2.reshape(1, -1)


if __name__ == "__main__":
    # Small shapes consistent with the module's forward.  hidden=160 / out=192
    # exercise the 128-lane padding path; N=8 exercises the batch-pad path.
    N, C, H, W = 8, 16, 16, 16          # input_dim = C = 16, H*W = 256
    hidden_dim, output_dim = 160, 192

    key = jax.random.PRNGKey(0)
    kx, kw1, kb1, kw2, kb2 = jax.random.split(key, 5)

    x = jax.random.normal(kx, (N, C, H, W), dtype=jnp.float32)
    w1 = jax.random.normal(kw1, (C, hidden_dim), dtype=jnp.float32) * 0.1
    b1 = jax.random.normal(kb1, (1, hidden_dim), dtype=jnp.float32) * 0.1
    gamma = jnp.ones((1, hidden_dim), dtype=jnp.float32)    # BatchNorm1d weight init
    beta = jnp.zeros((1, hidden_dim), dtype=jnp.float32)    # BatchNorm1d bias init
    w2 = jax.random.normal(kw2, (hidden_dim, output_dim), dtype=jnp.float32) * 0.1
    b2 = jax.random.normal(kb2, (1, output_dim), dtype=jnp.float32) * 0.1

    ref = reference_forward(x, w1, b1, gamma, beta, w2, b2)

    # 1) exact f32 parameters, small tile overrides so the multi-tile grids
    #    (2 HW tiles, 2 hidden tiles, 2 out tiles) and the K-accumulator path
    #    are all exercised.
    params_f32 = prepare_projector_params(w1, b1, gamma, beta, w2, b2,
                                          param_dtype=jnp.float32)
    out = projector_forward(x, params_f32, tile_hw=128, tile_h=128, tile_o=128)
    out = jax.block_until_ready(out)
    assert out.shape == (N, output_dim)
    assert jnp.allclose(out, ref, atol=1e-4, rtol=1e-4), "f32 mismatch vs reference"

    # 2) production default: bf16 weights / bf16 MXU operands / bf16 h stream;
    #    pooled, BN statistics and both matmul accumulators stay f32.
    params_bf16 = prepare_projector_params(w1, b1, gamma, beta, w2, b2)
    out_bf16 = projector_forward(x, params_bf16)
    out_bf16 = jax.block_until_ready(out_bf16)
    assert out_bf16.shape == (N, output_dim)
    assert jnp.allclose(out_bf16, ref, atol=1e-1, rtol=1e-1), "bf16 mismatch vs reference"

    print("KERNEL_OK")
</pallas_src>

<mosaic_0001>
module attributes {stable_mosaic.version = 11 : i64} {
  func.func @pool_kernel(%arg0: i32, %arg1: i32, %arg2: i32, %arg3: memref<8x16x128xf32, #tpu.memory_space<vmem>>, %arg4: memref<8x16xf32, #tpu.memory_space<vmem>>, %arg5: memref<8x16xf32, #tpu.memory_space<vmem>>) attributes {dimension_semantics = [#tpu.dimension_semantics<parallel>, #tpu.dimension_semantics<parallel>, #tpu.dimension_semantics<arbitrary>], iteration_bounds = array<i64: 1, 1, 2>, scalar_prefetch = 0 : i64, scratch_operands = 1 : i64, tpu.core_type = #tpu.core_type<tc>, window_params = [{transform_indices = @transform_0, window_bounds = array<i64: 8, 16, 128>}, {transform_indices = @transform_1, window_bounds = array<i64: 8, 16>}]} {
    %c0_i32 = arith.constant 0 : i32
    %0 = arith.cmpi eq, %arg2, %c0_i32 : i32
    %1 = arith.extui %0 : i1 to i32
    %c0_i32_0 = arith.constant 0 : i32
    %2 = arith.cmpi ne, %1, %c0_i32_0 : i32
    scf.if %2 {
      %cst_8 = arith.constant 0.000000e+00 : f32
      %11 = vector.broadcast %cst_8 : f32 to vector<8x16xf32>
      %c0_9 = arith.constant 0 : index
      %c0_10 = arith.constant 0 : index
      %12 = vector.load %arg5[%c0_9, %c0_10] : memref<8x16xf32, #tpu.memory_space<vmem>>, vector<8x16xf32>
      tpu.vector_store %arg5[%c0_9, %c0_10], %11 {strides = array<i32>} : memref<8x16xf32, #tpu.memory_space<vmem>>, vector<8x16xf32>,
    } else {
    }
    %c0 = arith.constant 0 : index
    %c0_1 = arith.constant 0 : index
    %3 = vector.load %arg5[%c0, %c0_1] : memref<8x16xf32, #tpu.memory_space<vmem>>, vector<8x16xf32>
    %c0_2 = arith.constant 0 : index
    %c0_3 = arith.constant 0 : index
    %c0_4 = arith.constant 0 : index
    %4 = vector.load %arg3[%c0_2, %c0_3, %c0_4] : memref<8x16x128xf32, #tpu.memory_space<vmem>>, vector<8x16x128xf32>
    %cst = arith.constant dense<0.000000e+00> : vector<8x16xf32>
    %5 = vector.multi_reduction <add>, %4, %cst [2] : vector<8x16x128xf32> to vector<8x16xf32>
    %6 = arith.addf %3, %5 : vector<8x16xf32>
    %c0_5 = arith.constant 0 : index
    %c0_6 = arith.constant 0 : index
    %7 = vector.load %arg5[%c0_5, %c0_6] : memref<8x16xf32, #tpu.memory_space<vmem>>, vector<8x16xf32>
    tpu.vector_store %arg5[%c0_5, %c0_6], %6 {strides = array<i32>} : memref<8x16xf32, #tpu.memory_space<vmem>>, vector<8x16xf32>,
    %c1_i32 = arith.constant 1 : i32
    %8 = arith.cmpi eq, %arg2, %c1_i32 : i32
    %9 = arith.extui %8 : i1 to i32
    %c0_i32_7 = arith.constant 0 : i32
    %10 = arith.cmpi ne, %9, %c0_i32_7 : i32
    scf.if %10 {
      %c0_8 = arith.constant 0 : index
      %c0_9 = arith.constant 0 : index
      %11 = vector.load %arg5[%c0_8, %c0_9] : memref<8x16xf32, #tpu.memory_space<vmem>>, vector<8x16xf32>
      %cst_10 = arith.constant 3.906250e-03 : f32
      %12 = vector.broadcast %cst_10 : f32 to vector<8x16xf32>
      %13 = arith.mulf %11, %12 : vector<8x16xf32>
      %c0_11 = arith.constant 0 : index
      %c0_12 = arith.constant 0 : index
      %14 = vector.load %arg4[%c0_11, %c0_12] : memref<8x16xf32, #tpu.memory_space<vmem>>, vector<8x16xf32>
      tpu.vector_store %arg4[%c0_11, %c0_12], %13 {strides = array<i32>} : memref<8x16xf32, #tpu.memory_space<vmem>>, vector<8x16xf32>,
    } else {
    }
    return
  }
  func.func @transform_0(%arg0: i32, %arg1: i32, %arg2: i32) -> (i32, i32, i32) {
    %c0_i32 = arith.constant 0 : i32
    return %arg0, %arg1, %arg2 : i32, i32, i32
  }
  func.func @transform_1(%arg0: i32, %arg1: i32, %arg2: i32) -> (i32, i32) {
    %c0_i32 = arith.constant 0 : i32
    return %arg0, %arg1 : i32, i32
  }
}

</mosaic_0001>

<llo_original>
// kernel: tpu_custom_call.1
$region0: #{tpu_custom_call.1}
  #allocation0 [shape = 'u32[]', space=smem, size = 0x4, offset = 0x4, fixed_abs, tag = 'smem constant byte address 0x4 - core index']
  #allocation1 [shape = 'u32[144,128]{1,0:T(1,128)}', space=vmem, size = 0x12000, scoped, tag = 'internal scratch']
  #allocation2 [shape = 'f32[8,16]{1,0:T(8,128)}', space=vmem, size = 0x1000, scoped, tag = 'scratch operand']
  %s0 = inlined_call_operand.hbm [shape: f32[8,16,256], index: 0, kind: input, shape index: {}]
  %s1 = inlined_call_operand.hbm [shape: f32[8,16], index: 1, kind: output, shape index: {}]
  %s2 = sld [smem:[#allocation0]]
  $region49: #{tpu_custom_call.1} parent=0
    _
  %s4 = ssub.s32 1, %s2
  %s5 = scalar_select 0, %s4, %s2
  $region1: #{tpu_custom_call.1} parent=0
    #allocation3 [shape = 'u8[131072]{0}', space=vmem, size = 0x20000, scoped, tag = 'input window, operand 0']
    #allocation4 [shape = 's32[2]{0}', space=sflag, size = 0x8, scoped, tag = 'scoped memory for tpu_custom_call.1']
    #allocation5 [shape = 's32[2]{0}', space=sflag, size = 0x8, scoped, tag = 'scoped memory for tpu_custom_call.1']
    #allocation6 [shape = 'u8[4096]{0}', space=vmem, size = 0x1000, scoped, tag = 'output window, operand 0, single buffered']
    %6 = vsyncpa [#allocation4], 0
    %s7 = scalar_lea.sflag [#allocation4], 1
    %8 = vsyncpa %s7, 0
    %9 = vsyncpa [#allocation5], 0
    loop: start=0, step=1, limit=4
    $region2: #{tpu_custom_call.1} parent=1 // loop_pre_header
      _
    $region3: #{tpu_custom_call.1} parent=1 // loop_header
      %s11 = sphi 0, %s15
      %p12 = scmp.ge.s32.totalorder %s11, 4
      %s18 = sphi 0, %s37
      %s19 = sphi 0, %s33
      %s20 = sphi 0, %s29
      %s21 = sphi 0, %s18
      %s22 = sphi 0, %s19
      %s23 = sphi 0, %s20
      %s24 = sphi 0, %s21
      %s25 = sphi 0, %s22
      %s26 = sphi 0, %s23
      %s44 = sphi 0, %s46
      %s47 = sphi 0, %s44
      %s48 = sphi 0, %s47
      %s64 = sphi 0, %s48
      %s72 = sphi 0, %s74
      %s75 = sphi 0, %s72
      %s76 = sphi 0, %s75
      %s92 = sphi 0, %s76
    $region4: #{tpu_custom_call.1} parent=1 // loop_header_branch
      %14 = sbr.rel (%p12) target = $region8
    $region5: #{tpu_custom_call.1} parent=1 // loop_body
      %s16 = ssub.s32 %s11, 1
      %s17 = ssub.s32 %s11, 2
      %s27 = sadd.s32 1, %s20
      %p28 = scmp.ge.s32.totalorder %s27, 2
      %s29 = scalar_select %p28, 0, %s27
      %s30 = sadd.s32 1, %s19
      %s31 = scalar_select %p28, %s30, %s19
      %p32 = scmp.ge.s32.totalorder %s31, 1
      %s33 = scalar_select %p32, 0, %s31
      %s34 = sadd.s32 1, %s18
      %s35 = scalar_select %p32, %s34, %s18
      %p36 = scmp.ge.s32.totalorder %s35, 1
      %s37 = scalar_select %p36, 0, %s35
      %s38 = ssub.s32 %s18, %s37
      %s39 = ssub.s32 %s19, %s33
      %s40 = sor.u32 %s38, %s39
      %s41 = ssub.s32 %s20, %s29
      %s42 = sor.u32 %s40, %s41
      %p43 = scmp.eq.s32.totalorder %s42, 0
      %s45 = sadd.s32 %s44, 1
      %s46 = scalar_select %p43, %s44, %s45
      %p49 = pneg %p43
      %p50 = scmp.eq.s32.totalorder %s11, 1
      %p51 = por %p49, %p50
      %p52 = scmp.ne.s32.totalorder %s44, %s47
      %p53 = scmp.eq.s32.totalorder %s11, 0
      %p54 = por %p52, %p53
      %p55 = scmp.ne.s32.totalorder %s44, %s47
      %p56 = scmp.eq.s32.totalorder %s16, 1
      %p57 = por %p55, %p56
      %p58 = scmp.ne.s32.totalorder %s47, %s48
      %p59 = scmp.eq.s32.totalorder %s16, 0
      %p60 = por %p58, %p59
      %p61 = scmp.ne.s32.totalorder %s47, %s48
      %p62 = scmp.eq.s32.totalorder %s17, 1
      %p63 = por %p61, %p62
      %p65 = scmp.ne.s32.totalorder %s48, %s64
      %p66 = scmp.eq.s32.totalorder %s17, 0
      %p67 = por %p65, %p66
      %s68 = ssub.s32 %s18, %s37
      %s69 = ssub.s32 %s19, %s33
      %s70 = sor.u32 %s68, %s69
      %p71 = scmp.eq.s32.totalorder %s70, 0
      %s73 = sadd.s32 %s72, 1
      %s74 = scalar_select %p71, %s72, %s73
      %p77 = pneg %p71
      %p78 = scmp.eq.s32.totalorder %s11, 1
      %p79 = por %p77, %p78
      %p80 = scmp.ne.s32.totalorder %s72, %s75
      %p81 = scmp.eq.s32.totalorder %s11, 0
      %p82 = por %p80, %p81
      %p83 = scmp.ne.s32.totalorder %s72, %s75
      %p84 = scmp.eq.s32.totalorder %s16, 1
      %p85 = por %p83, %p84
      %p86 = scmp.ne.s32.totalorder %s75, %s76
      %p87 = scmp.eq.s32.totalorder %s16, 0
      %p88 = por %p86, %p87
      %p89 = scmp.ne.s32.totalorder %s75, %s76
      %p90 = scmp.eq.s32.totalorder %s17, 1
      %p91 = por %p89, %p90
      %p93 = scmp.ne.s32.totalorder %s76, %s92
      %p94 = scmp.eq.s32.totalorder %s17, 0
      %p95 = por %p93, %p94
      %p96 = scmp.le.s32.totalorder 1, %s11
      %p97 = scmp.lt.s32.totalorder %s11, 3
      %p98 = pnand %p96, %p97
      %p99 = pneg %p98
      // Predicated region
      $region9: #{tpu_custom_call.1} parent=5 // pred_check
        _
      $region10: #{tpu_custom_call.1} parent=5 // pred_check_branch
        %101 = sbr.rel (%p98) target = $region12
      $region11: #{tpu_custom_call.1} parent=5 // pred_region
        %s102 = ssub.s32 %s11, 1
      $region12: #{tpu_custom_call.1} parent=5 // pred_fallthru
        _
      %p103 = scmp.lt.s32.totalorder %s11, 2
      // Predicated region
      $region13: #{tpu_custom_call.1} parent=5 // pred_check
        %p104 = pneg %p103
      $region14: #{tpu_custom_call.1} parent=5 // pred_check_branch
        %106 = sbr.rel (%p104) target = $region16
      $region15: #{tpu_custom_call.1} parent=5 // pred_region
        // Predicated region
        $region17: #{tpu_custom_call.1} parent=15 // pred_check
          %p107 = pneg %p54
        $region18: #{tpu_custom_call.1} parent=15 // pred_check_branch
          %109 = sbr.rel (%p107) target = $region20
        $region19: #{tpu_custom_call.1} parent=15 // pred_region
          %s110 = sand.u32 %s44, 1
          %s111 = scalar_lea.sflag [#allocation4], %s110
          %s112 = sand.u32 %s44, 1
          %s113 = smul.addr %s112, 128
          %s114 = scalar_lea.vmem [#allocation3], %s113
          %s115 = smul.u32 8, %s18
          %s116 = smul.u32 2, %s19
          %s118 = ssub.s32 2048, 2048
          %119 = vsyncadd %s111, %s118
          %s120 = smul.addr %s116, 2
          %s121 = sadd.s32 %s20, %s120
          %s122 = smul.addr %s115, 4
          %s123 = sadd.s32 %s121, %s122
          %s124 = smul.addr %s123, 128
          %s125 = scalar_lea.hbm %s0, %s124
          %s126 = sshll.u32 %s114, 4
          %s127 = int_to_ptr.vmem [resolvable:$true] %s126
          %132 = dma.hbm_to_vmem [thread:$0]  %s125, 2048, %s127, %s111, 256, 128, 8
        $region20: #{tpu_custom_call.1} parent=15 // pred_fallthru
          _
      $region16: #{tpu_custom_call.1} parent=5 // pred_fallthru
        _
      %p133 = scmp.le.s32.totalorder 1, %s11
      %p134 = scmp.lt.s32.totalorder %s11, 3
      %p135 = pnand %p133, %p134
      %p136 = pneg %p135
      // Predicated region
      $region21: #{tpu_custom_call.1} parent=5 // pred_check
        _
      $region22: #{tpu_custom_call.1} parent=5 // pred_check_branch
        %138 = sbr.rel (%p135) target = $region24
      $region23: #{tpu_custom_call.1} parent=5 // pred_region
        %s139 = ssub.s32 %s11, 1
        %s140 = sand.u32 %s47, 1
        %s141 = scalar_lea.sflag [#allocation4], %s140
        %s142 = sand.u32 %s47, 1
        %s143 = smul.addr %s142, 128
        %s144 = scalar_lea.vmem [#allocation3], %s143
        // Predicated region
        $region25: #{tpu_custom_call.1} parent=23 // pred_check
          %p145 = pneg %p60
        $region26: #{tpu_custom_call.1} parent=23 // pred_check_branch
          %147 = sbr.rel (%p145) target = $region28
        $region27: #{tpu_custom_call.1} parent=23 // pred_region
          %148 = dma.done %s141, 2048
        $region28: #{tpu_custom_call.1} parent=23 // pred_fallthru
          _
        %s149 = sand.u32 %s47, 1
        %s150 = scalar_lea.sflag [#allocation4], %s149
        %s151 = sand.u32 %s47, 1
        %s152 = smul.addr %s151, 128
        %s153 = scalar_lea.vmem [#allocation3], %s152
        %p154 = pneg %p60
        %p155 = pneg %p57
        %p156 = pneg %p88
        %p157 = pneg %p85
        %s158 = smul.u32 8, %s21
        %s159 = smul.u32 2, %s22
        %p160 = scmp.eq.s32.totalorder %s23, 0
        // Predicated region
        $region29: #{tpu_custom_call.1} parent=23 // pred_check
          %p161 = pneg %p160
        $region30: #{tpu_custom_call.1} parent=23 // pred_check_branch
          %163 = sbr.rel (%p161) target = $region32
        $region31: #{tpu_custom_call.1} parent=23 // pred_region
          %vm164 = vcmask 130048
          %165 = vst.msk [vmem:[#allocation2] sm:$0xff] %vm164, 0.0
        $region32: #{tpu_custom_call.1} parent=23 // pred_fallthru
          _
        %v166 = vld [vmem:[#allocation2] sm:$0xff]
        %v167 = vld [vmem:[%s144] sm:$0xff]
        %v168 = vld [vmem:[%s144 + $0x8] sm:$0xff]
        %v169 = vld [vmem:[%s144 + $0x10] sm:$0xff]
        %v170 = vld [vmem:[%s144 + $0x18] sm:$0xff]
        %v171 = vld [vmem:[%s144 + $0x20] sm:$0xff]
        %v172 = vld [vmem:[%s144 + $0x28] sm:$0xff]
        %v173 = vld [vmem:[%s144 + $0x30] sm:$0xff]
        %v174 = vld [vmem:[%s144 + $0x38] sm:$0xff]
        %v175 = vld [vmem:[%s144 + $0x40] sm:$0xff]
        %v176 = vld [vmem:[%s144 + $0x48] sm:$0xff]
        %v177 = vld [vmem:[%s144 + $0x50] sm:$0xff]
        %v178 = vld [vmem:[%s144 + $0x58] sm:$0xff]
        %v179 = vld [vmem:[%s144 + $0x60] sm:$0xff]
        %v180 = vld [vmem:[%s144 + $0x68] sm:$0xff]
        %v181 = vld [vmem:[%s144 + $0x70] sm:$0xff]
        %v182 = vld [vmem:[%s144 + $0x78] sm:$0xff]
        %183 = vadd.xlane.f32.xlu0 %v167
        %v184 = vpop.xlane.xlu0 %183
        %185 = vadd.xlane.f32.xlu0 %v168
        %v186 = vpop.xlane.xlu0 %185
        %187 = vadd.xlane.f32.xlu0 %v169
        %v188 = vpop.xlane.xlu0 %187
        %189 = vadd.xlane.f32.xlu0 %v170
        %v190 = vpop.xlane.xlu0 %189
        %191 = vadd.xlane.f32.xlu0 %v171
        %v192 = vpop.xlane.xlu0 %191
        %193 = vadd.xlane.f32.xlu0 %v172
        %v194 = vpop.xlane.xlu0 %193
        %195 = vadd.xlane.f32.xlu0 %v173
        %v196 = vpop.xlane.xlu0 %195
        %197 = vadd.xlane.f32.xlu0 %v174
        %v198 = vpop.xlane.xlu0 %197
        %199 = vadd.xlane.f32.xlu0 %v175
        %v200 = vpop.xlane.xlu0 %199
        %201 = vadd.xlane.f32.xlu0 %v176
        %v202 = vpop.xlane.xlu0 %201
        %203 = vadd.xlane.f32.xlu0 %v177
        %v204 = vpop.xlane.xlu0 %203
        %205 = vadd.xlane.f32.xlu0 %v178
        %v206 = vpop.xlane.xlu0 %205
        %207 = vadd.xlane.f32.xlu0 %v179
        %v208 = vpop.xlane.xlu0 %207
        %209 = vadd.xlane.f32.xlu0 %v180
        %v210 = vpop.xlane.xlu0 %209
        %211 = vadd.xlane.f32.xlu0 %v181
        %v212 = vpop.xlane.xlu0 %211
        %213 = vadd.xlane.f32.xlu0 %v182
        %v214 = vpop.xlane.xlu0 %213
        %v231 = vlaneseq
        %v232 = vand.u32 %v231, 127
        %v233 = vlaneseq
        %v234 = vshrl.u32 %v233, 7
        %v235 = vsub.s32 %v232, %v234
        %v236 = vrot.slane %v184, %v235
        %v237 = vadd.s32 %v232, 4294967288
        %v238 = vlaneseq
        %v239 = vshrl.u32 %v238, 7
        %v240 = vsub.s32 %v237, %v239
        %v241 = vrot.slane %v186, %v240
        %vm242 = vcmask 130112
        %v243 = vsel %vm242, %v241, %v236
        %v244 = vlaneseq
        %v245 = vshrl.u32 %v244, 7
        %v246 = vsub.s32 %v232, %v245
        %v247 = vrot.slane %v188, %v246
        %v248 = vlaneseq
        %v249 = vshrl.u32 %v248, 7
        %v250 = vsub.s32 %v237, %v249
        %v251 = vrot.slane %v190, %v250
        %v252 = vsel %vm242, %v251, %v247
        %v253 = vlaneseq
        %v254 = vshrl.u32 %v253, 7
        %v255 = vsub.s32 %v232, %v254
        %v256 = vrot.slane %v192, %v255
        %v257 = vlaneseq
        %v258 = vshrl.u32 %v257, 7
        %v259 = vsub.s32 %v237, %v258
        %v260 = vrot.slane %v194, %v259
        %v261 = vsel %vm242, %v260, %v256
        %v262 = vlaneseq
        %v263 = vshrl.u32 %v262, 7
        %v264 = vsub.s32 %v232, %v263
        %v265 = vrot.slane %v196, %v264
        %v266 = vlaneseq
        %v267 = vshrl.u32 %v266, 7
        %v268 = vsub.s32 %v237, %v267
        %v269 = vrot.slane %v198, %v268
        %v270 = vsel %vm242, %v269, %v265
        %v271 = vlaneseq
        %v272 = vshrl.u32 %v271, 7
        %v273 = vsub.s32 %v232, %v272
        %v274 = vrot.slane %v200, %v273
        %v275 = vlaneseq
        %v276 = vshrl.u32 %v275, 7
        %v277 = vsub.s32 %v237, %v276
        %v278 = vrot.slane %v202, %v277
        %v279 = vsel %vm242, %v278, %v274
        %v280 = vlaneseq
        %v281 = vshrl.u32 %v280, 7
        %v282 = vsub.s32 %v232, %v281
        %v283 = vrot.slane %v204, %v282
        %v284 = vlaneseq
        %v285 = vshrl.u32 %v284, 7
        %v286 = vsub.s32 %v237, %v285
        %v287 = vrot.slane %v206, %v286
        %v288 = vsel %vm242, %v287, %v283
        %v289 = vlaneseq
        %v290 = vshrl.u32 %v289, 7
        %v291 = vsub.s32 %v232, %v290
        %v292 = vrot.slane %v208, %v291
        %v293 = vlaneseq
        %v294 = vshrl.u32 %v293, 7
        %v295 = vsub.s32 %v237, %v294
        %v296 = vrot.slane %v210, %v295
        %v297 = vsel %vm242, %v296, %v292
        %v298 = vlaneseq
        %v299 = vshrl.u32 %v298, 7
        %v300 = vsub.s32 %v232, %v299
        %v301 = vrot.slane %v212, %v300
        %v302 = vlaneseq
        %v303 = vshrl.u32 %v302, 7
        %v304 = vsub.s32 %v237, %v303
        %v305 = vrot.slane %v214, %v304
        %v306 = vsel %vm242, %v305, %v301
        %vm307 = vcmask 1041409
        %v308 = vsel %vm307, %v252, %v243
        %vm309 = vcmask 1042434
        %v310 = vsel %vm309, %v261, %v308
        %vm311 = vcmask 1043459
        %v312 = vsel %vm311, %v270, %v310
        %vm313 = vcmask 1044484
        %v314 = vsel %vm313, %v279, %v312
        %vm315 = vcmask 1045509
        %v316 = vsel %vm315, %v288, %v314
        %vm317 = vcmask 1046534
        %v318 = vsel %vm317, %v297, %v316
        %vm319 = vcmask 1047559
        %v320 = vsel %vm319, %v306, %v318
        %v322 = vadd.f32 %v166, %v320
        %vm323 = vcmask 130048
        %324 = vst.msk [vmem:[#allocation2] sm:$0xff] %vm323, %v322
        %p325 = scmp.eq.s32.totalorder %s23, 1
        // Predicated region
        $region33: #{tpu_custom_call.1} parent=23 // pred_check
          %p326 = pneg %p325
        $region34: #{tpu_custom_call.1} parent=23 // pred_check_branch
          %328 = sbr.rel (%p326) target = $region36
        $region35: #{tpu_custom_call.1} parent=23 // pred_region
          %v329 = vld [vmem:[#allocation2] sm:$0xff]
          %v330 = vmul.f32 %v329, 0.00390625
          %331 = vst.msk [vmem:[#allocation6] sm:$0xff] %vm323, %v330
        $region36: #{tpu_custom_call.1} parent=23 // pred_fallthru
          _
        // Predicated region
        $region37: #{tpu_custom_call.1} parent=23 // pred_check
          %p332 = pneg %p85
        $region38: #{tpu_custom_call.1} parent=23 // pred_check_branch
          %334 = sbr.rel (%p332) target = $region40
        $region39: #{tpu_custom_call.1} parent=23 // pred_region
          %s336 = ssub.s32 128, 128
          %337 = vsyncadd [#allocation5], %s336
          %s338 = sadd.s32 %s22, %s21
          %s339 = smul.addr %s338, 128
          %s340 = scalar_lea.hbm %s1, %s339
          %s342 = sshll.u32 [#allocation6], 4
          %s343 = int_to_ptr.vmem [resolvable:$true] %s342
          %345 = dma.vmem_to_hbm [thread:$0]  %s343, 128, %s340, [#allocation5]
        $region40: #{tpu_custom_call.1} parent=23 // pred_fallthru
          _
        // Predicated region
        $region41: #{tpu_custom_call.1} parent=23 // pred_check
          %p346 = pneg %p85
        $region42: #{tpu_custom_call.1} parent=23 // pred_check_branch
          %348 = sbr.rel (%p346) target = $region44
        $region43: #{tpu_custom_call.1} parent=23 // pred_region
          %349 = dma.done [#allocation5], 128
        $region44: #{tpu_custom_call.1} parent=23 // pred_fallthru
          _
      $region24: #{tpu_custom_call.1} parent=5 // pred_fallthru
        _
      %p350 = scmp.le.s32.totalorder 2, %s11
      // Predicated region
      $region45: #{tpu_custom_call.1} parent=5 // pred_check
        %p351 = pneg %p350
      $region46: #{tpu_custom_call.1} parent=5 // pred_check_branch
        %353 = sbr.rel (%p351) target = $region48
      $region47: #{tpu_custom_call.1} parent=5 // pred_region
        %s354 = ssub.s32 %s11, 2
      $region48: #{tpu_custom_call.1} parent=5 // pred_fallthru
        _
    $region6: #{tpu_custom_call.1} parent=1 // loop_footer
      %s15 = sadd.s32 1, %s11
    $region7: #{tpu_custom_call.1} parent=1 // loop_footer_branch
      %10 = sbr.rel target = $region3
    $region8: #{tpu_custom_call.1} parent=1 // loop_exit
      _
    %355 = vsyncpa [#allocation4], 1
    %s356 = scalar_lea.sflag [#allocation4], 1
    %357 = vsyncpa %s356, 1
    %358 = vsyncpa [#allocation5], 1
    %s359 = scalar_lea.sflag [#allocation5], 1
    %360 = vsyncpa %s359, 1

</llo_original>
